<compile_context>
chip_gen: v7x
topology: tpu7x:2x2x1
jax: 0.10.0
libtpu: 0.0.40
codegen_flags: <defaults>
</compile_context>

<pallas_src>
import jax
import jax.numpy as jnp
from jax.experimental import pallas as pl
from jax.experimental.pallas import tpu as pltpu


def _uw_kernel(idx_ref, scale_ref, loss_ref, out_ref):
    # idx_ref   : SMEM (1,)        int32 -- task index
    # scale_ref : SMEM (num_task,) f32   -- loss_scale parameter
    # loss_ref  : SMEM (1,)        f32   -- scalar loss
    # out_ref   : VMEM (1, 1)      f32   -- weighted loss
    num_task = scale_ref.shape[0]
    # Clamp to avoid an OOB SMEM read (PyTorch would raise; negative /
    # out-of-range indices are clamped here instead of wrapping).
    idx = jnp.clip(idx_ref[0], 0, num_task - 1)

    s = scale_ref[idx]        # one scalar sld (dynamic index into SMEM)
    loss = loss_ref[0]        # scalar

    # Splat the selected scale into a single (1, 1) vector value so the exp
    # runs on the EUP; everything else is one vreg worth of VPU work.
    sv = jnp.full((1, 1), s, jnp.float32)
    out_ref[...] = 0.5 * (jnp.exp(-sv) * loss + sv)


@jax.jit
def uncertainty_weighting_forward(loss_scale, loss, task_index):
    """JAX wrapper reproducing UncertaintyWeighting.forward.

    loss_scale : (num_task,) f32 parameter
    loss       : scalar f32
    task_index : python int / int32 scalar
    returns    : (1, 1) f32 array holding the weighted loss
    """
    idx_arr = jnp.asarray(task_index, jnp.int32).reshape(1)
    loss_arr = jnp.asarray(loss, jnp.float32).reshape(1)
    scale_arr = loss_scale.astype(jnp.float32)

    out = pl.pallas_call(
        _uw_kernel,
        out_shape=jax.ShapeDtypeStruct((1, 1), jnp.float32),
        in_specs=[
            pl.BlockSpec(memory_space=pltpu.SMEM),   # task_index (1,)
            pl.BlockSpec(memory_space=pltpu.SMEM),   # loss_scale (num_task,)
            pl.BlockSpec(memory_space=pltpu.SMEM),   # loss (1,)
        ],
        out_specs=pl.BlockSpec(memory_space=pltpu.VMEM),
    )(idx_arr, scale_arr, loss_arr)
    # Returned as (1, 1); reshape/index at the consumer if a 0-d scalar is
    # needed (kept out of the wrapper per perf feedback).
    return out


def get_loss_weight(loss_scale):
    # Trivial elementwise op, matches PyTorch get_loss_weight (plain JAX).
    return jnp.exp(-loss_scale) * 0.5


if __name__ == "__main__":
    key = jax.random.PRNGKey(0)
    k_scale, k_loss = jax.random.split(key)

    num_task = 4
    # PyTorch default init is zeros; use small random values so the exp path
    # is actually exercised.
    loss_scale = 0.1 * jax.random.normal(k_scale, (num_task,), dtype=jnp.float32)
    loss = jax.random.uniform(k_loss, (), dtype=jnp.float32) * 2.0
    task_index = 2

    out = uncertainty_weighting_forward(loss_scale, loss, task_index)
    out = jax.block_until_ready(out)

    # Pure-JAX reference of the PyTorch forward.
    s = loss_scale[task_index]
    ref = 0.5 * (jnp.exp(-s) * loss + s)

    assert jnp.allclose(out.reshape(()), ref, rtol=1e-6, atol=1e-6), (out, ref)
    print("KERNEL_OK")
</pallas_src>

<mosaic_0001>
module attributes {stable_mosaic.version = 11 : i64} {
  func.func @_uw_kernel(%arg0: memref<1xi32, #tpu.memory_space<smem>>, %arg1: memref<4xf32, #tpu.memory_space<smem>>, %arg2: memref<1xf32, #tpu.memory_space<smem>>, %arg3: memref<1x1xf32, #tpu.memory_space<vmem>>) attributes {dimension_semantics = [], scalar_prefetch = 0 : i64, scratch_operands = 0 : i64, tpu.core_type = #tpu.core_type<tc>} {
    %c0 = arith.constant 0 : index
    %0 = memref.load %arg0[%c0] : memref<1xi32, #tpu.memory_space<smem>>
    %c0_i32 = arith.constant 0 : i32
    %c3_i32 = arith.constant 3 : i32
    %1 = arith.maxsi %c0_i32, %0 : i32
    %2 = arith.minsi %c3_i32, %1 : i32
    %3 = arith.index_cast %2 : i32 to index
    %4 = memref.load %arg1[%3] : memref<4xf32, #tpu.memory_space<smem>>
    %c0_0 = arith.constant 0 : index
    %5 = memref.load %arg2[%c0_0] : memref<1xf32, #tpu.memory_space<smem>>
    %6 = vector.broadcast %4 : f32 to vector<1x1xf32>
    %cst = arith.constant 0.000000e+00 : f32
    %7 = vector.broadcast %cst : f32 to vector<1x1xf32>
    %8 = arith.subf %7, %6 : vector<1x1xf32>
    %9 = math.exp %8 : vector<1x1xf32>
    %10 = vector.broadcast %5 : f32 to vector<1x1xf32>
    %11 = arith.mulf %9, %10 : vector<1x1xf32>
    %12 = arith.addf %11, %6 : vector<1x1xf32>
    %cst_1 = arith.constant 5.000000e-01 : f32
    %13 = vector.broadcast %cst_1 : f32 to vector<1x1xf32>
    %14 = arith.mulf %13, %12 : vector<1x1xf32>
    %c0_2 = arith.constant 0 : index
    %c0_3 = arith.constant 0 : index
    %15 = vector.load %arg3[%c0_2, %c0_3] : memref<1x1xf32, #tpu.memory_space<vmem>>, vector<1x1xf32>
    tpu.vector_store %arg3[%c0_2, %c0_3], %14 {strides = array<i32>} : memref<1x1xf32, #tpu.memory_space<vmem>>, vector<1x1xf32>,
    return
  }
}

</mosaic_0001>

<llo_original>
// kernel: uncertainty_weighting_forward.1
$region0: #{uncertainty_weighting_forward.1}
  #allocation0 [shape = 'u32[]', space=smem, size = 0x4, offset = 0x4, fixed_abs, tag = 'smem constant byte address 0x4 - core index']
  #allocation1 [shape = 'u32[144,128]{1,0:T(1,128)}', space=vmem, size = 0x12000, scoped, tag = 'internal scratch']
  #allocation2 [shape = 's32[1]{0:T(128)S(6)}', space=smem, size = 0x200, scoped, tag = 'scoped memory for uncertainty_weighting_forward.1']
  #allocation3 [shape = 'f32[1]{0:T(128)S(6)}', space=smem, size = 0x200, scoped, tag = 'scoped memory for uncertainty_weighting_forward.1']
  %s0 = inlined_call_operand.<no memory space> [shape: s32[1], index: 0, kind: input, shape index: {}]
  %s1 = inlined_call_operand.vmem [shape: f32[4], index: 1, kind: input, shape index: {}]
  %s2 = inlined_call_operand.<no memory space> [shape: f32[1], index: 2, kind: input, shape index: {}]
  %s3 = inlined_call_operand.hbm [shape: f32[1,1], index: 3, kind: output, shape index: {}]
  %s4 = sld [smem:[#allocation0]]
  $region26: #{uncertainty_weighting_forward.1} parent=0
    _
  %s6 = ssub.s32 1, %s4
  %s7 = scalar_select 0, %s6, %s4
  %8 = sst [smem:[#allocation2]] %s0
  %9 = sst [smem:[#allocation3]] %s2
  $region1: #{uncertainty_weighting_forward.1} parent=0
    #allocation4 [shape = 'u8[512]{0}', space=smem, size = 0x200, scoped, tag = 'input window, operand 1, single buffered']
    #allocation5 [shape = 's32[1]{0}', space=sflag, size = 0x4, scoped, tag = 'scoped memory for uncertainty_weighting_forward.1']
    #allocation6 [shape = 's32[1]{0}', space=sflag, size = 0x4, scoped, tag = 'scoped memory for uncertainty_weighting_forward.1']
    #allocation7 [shape = 'u8[512]{0}', space=vmem, size = 0x400, scoped, tag = 'output window, operand 0, single buffered']
    %10 = vsyncpa [#allocation6], 0
    %11 = vsyncpa [#allocation5], 0
    // Predicated region
    $region2: #{uncertainty_weighting_forward.1} parent=1 // pred_check
      _
    $region3: #{uncertainty_weighting_forward.1} parent=1 // pred_check_branch
      %13 = sbr.rel (0) target = $region5
    $region4: #{uncertainty_weighting_forward.1} parent=1 // pred_region
      _
    $region5: #{uncertainty_weighting_forward.1} parent=1 // pred_fallthru
      _
    // Predicated region
    $region6: #{uncertainty_weighting_forward.1} parent=1 // pred_check
      _
    $region7: #{uncertainty_weighting_forward.1} parent=1 // pred_check_branch
      %15 = sbr.rel (0) target = $region9
    $region8: #{uncertainty_weighting_forward.1} parent=1 // pred_region
      %s17 = ssub.s32 16, 16
      %18 = vsyncadd [#allocation6], %s17
      %s20 = sshll.u32 %s1, 4
      %s21 = int_to_ptr.vmem [resolvable:$true] %s20
      %23 = dma.vmem_to_smem %s21, 16, [#allocation4], [#allocation6]
    $region9: #{uncertainty_weighting_forward.1} parent=1 // pred_fallthru
      _
    // Predicated region
    $region10: #{uncertainty_weighting_forward.1} parent=1 // pred_check
      _
    $region11: #{uncertainty_weighting_forward.1} parent=1 // pred_check_branch
      %25 = sbr.rel (0) target = $region13
    $region12: #{uncertainty_weighting_forward.1} parent=1 // pred_region
      _
    $region13: #{uncertainty_weighting_forward.1} parent=1 // pred_fallthru
      _
    // Predicated region
    $region14: #{uncertainty_weighting_forward.1} parent=1 // pred_check
      _
    $region15: #{uncertainty_weighting_forward.1} parent=1 // pred_check_branch
      %27 = sbr.rel (0) target = $region17
    $region16: #{uncertainty_weighting_forward.1} parent=1 // pred_region
      %28 = dma.done [#allocation6], 16
    $region17: #{uncertainty_weighting_forward.1} parent=1 // pred_fallthru
      _
    %29 = sfence
    %s30 = sld [smem:[#allocation2]]
    %p31 = scmp.gt.s32.totalorder %s30, 0
    %s32 = scalar_select %p31, %s30, 0
    %p33 = scmp.lt.s32.totalorder %s32, 3
    %s34 = scalar_select %p33, %s32, 3
    %s35 = sld [smem:[#allocation4 + %s34]]
    %s36 = sld [smem:[#allocation3]]
    %v37 = vstv %s35
    %v38 = vsub.f32 0.0, %v37
    %v39 = vmul.f32 %v38, 1.442695
    %v40 = vpow.pop %v39
    %v41 = vstv %s36
    %v42 = vmul.f32 %v40, %v41
    %v43 = vadd.f32 %v42, %v37
    %v44 = vmul.f32 %v43, 0.5
    %vm45 = vcmask 0
    %46 = vst.msk [vmem:[#allocation7] sm:$0x1] %vm45, %v44
    // Predicated region
    $region18: #{uncertainty_weighting_forward.1} parent=1 // pred_check
      _
    $region19: #{uncertainty_weighting_forward.1} parent=1 // pred_check_branch
      %48 = sbr.rel (0) target = $region21
    $region20: #{uncertainty_weighting_forward.1} parent=1 // pred_region
      %s50 = ssub.s32 16, 16
      %51 = vsyncadd [#allocation5], %s50
      %s53 = sshll.u32 [#allocation7], 4
      %s54 = int_to_ptr.vmem [resolvable:$true] %s53
      %56 = dma.vmem_to_hbm [thread:$0]  %s54, 16, %s3, [#allocation5]
    $region21: #{uncertainty_weighting_forward.1} parent=1 // pred_fallthru
      _
    // Predicated region
    $region22: #{uncertainty_weighting_forward.1} parent=1 // pred_check
      _
    $region23: #{uncertainty_weighting_forward.1} parent=1 // pred_check_branch
      %58 = sbr.rel (0) target = $region25
    $region24: #{uncertainty_weighting_forward.1} parent=1 // pred_region
      %59 = dma.done [#allocation5], 16
    $region25: #{uncertainty_weighting_forward.1} parent=1 // pred_fallthru
      _
    %60 = vsyncpa [#allocation5], 1
    %61 = vsyncpa [#allocation6], 1

</llo_original>
